<compile_context>
chip_gen: v7x
topology: tpu7x:2x2x1
jax: 0.10.0
libtpu: 0.0.40
codegen_flags: <defaults>
</compile_context>

<pallas_src>
import functools

import jax
import jax.numpy as jnp
from jax import lax
from jax.experimental import pallas as pl
from jax.experimental.pallas import tpu as pltpu


# ---------------------------------------------------------------------------
# Kernels
# ---------------------------------------------------------------------------

def _adain_kernel(x_ref, p_ref, o_ref, *, eps, inv_hw):
    """Single-HBM-pass AdaIN: one block = `tile` (b, c) rows x full H*W."""
    # x_ref / o_ref: (tile, HW) logical view (lane padding handled by Mosaic,
    #                so reductions over the last dim never see garbage lanes).
    # p_ref:         (tile, 2) packed fp32 [weight, bias] rows for this block.
    #
    # Two-pass centered statistics in fp32 (matches F.batch_norm's biased
    # variance, avoids E[x^2]-mean^2 cancellation). x is re-read from the
    # VMEM-resident block per pass rather than keeping a fp32 slab live.
    s = jnp.sum(x_ref[...].astype(jnp.float32), axis=-1, keepdims=True)
    mean = s * inv_hw

    d = x_ref[...].astype(jnp.float32) - mean
    var = jnp.sum(d * d, axis=-1, keepdims=True) * inv_hw
    inv = lax.rsqrt(var + eps)

    w = p_ref[:, 0:1]
    b = p_ref[:, 1:2]
    scale = inv * w                     # (tile, 1)
    shift = b - mean * scale            # (tile, 1)

    o_ref[...] = (x_ref[...].astype(jnp.float32) * scale + shift).astype(o_ref.dtype)


def _stats_kernel(x_ref, p_ref, sc_ref, s_acc, ss_acc, *, eps, hw, inv_hw):
    """Chunked-HW fallback, pass 1: accumulate per-row sum / sum-of-squares."""
    k = pl.program_id(1)

    @pl.when(k == 0)
    def _():
        s_acc[...] = jnp.zeros_like(s_acc)
        ss_acc[...] = jnp.zeros_like(ss_acc)

    chunk = x_ref.shape[1]
    xf = x_ref[...].astype(jnp.float32)
    if hw % chunk != 0:
        # Ragged last chunk: mask the out-of-bounds lanes before summing.
        lane = lax.broadcasted_iota(jnp.int32, xf.shape, 1) + k * chunk
        xf = jnp.where(lane < hw, xf, 0.0)
    s_acc[...] += jnp.sum(xf, axis=-1, keepdims=True)
    ss_acc[...] += jnp.sum(xf * xf, axis=-1, keepdims=True)

    @pl.when(k == pl.num_programs(1) - 1)
    def _():
        mean = s_acc[...] * inv_hw
        # TODO(synk): one-pass E[x^2]-mean^2 here can lose precision when
        # |mean| >> std; a chunked two-pass would cost one more full HBM sweep.
        var = jnp.maximum(ss_acc[...] * inv_hw - mean * mean, 0.0)
        inv = lax.rsqrt(var + eps)
        w = p_ref[:, 0:1]
        b = p_ref[:, 1:2]
        scale = inv * w
        sc_ref[...] = jnp.concatenate([scale, b - mean * scale], axis=-1)


def _apply_kernel(x_ref, sc_ref, o_ref):
    """Chunked-HW fallback, pass 2: out = x * scale + shift."""
    scale = sc_ref[:, 0:1]
    shift = sc_ref[:, 1:2]
    o_ref[...] = (x_ref[...].astype(jnp.float32) * scale + shift).astype(o_ref.dtype)


# ---------------------------------------------------------------------------
# Tiling / VMEM heuristics
# ---------------------------------------------------------------------------

def _round_up(x, m):
    return (x + m - 1) // m * m


def _vmem_limit_bytes():
    """Generation-aware scoped-VMEM limit.

    v5e/v6e: 128 MiB physical per core -> raise the scoped limit to 64 MiB
    (the 16/32 MiB defaults force tiny tiles; v5e has the lowest HBM BW so big
    blocks matter most there).  v7x: 64 MiB physical per TensorCore -> ~48 MiB
    so double-buffered blocks plus fp32 temporaries stay safe.  If the query
    fails (AOT / mock compile), default to the large-VMEM branch.
    """
    try:
        cap = pltpu.get_tpu_info().vmem_capacity_bytes
    except Exception:
        cap = None
    if cap is None or cap >= (128 << 20):
        return 64 << 20
    return max(32 << 20, min(48 << 20, (cap * 3) // 4))


def _choose_tile(bc, hw, itemsize, vmem_limit):
    """Row tile for the single-pass kernel, or None -> chunked-HW fallback.

    Per-row live VMEM: 2x in + 2x out pipelined buffers (native dtype) plus
    ~2 fp32 working slabs the compiler may materialize in-kernel.
    """
    hw_lanes = _round_up(hw, 128)            # actual VMEM footprint of a row
    min_tile = max(8, 32 // itemsize)        # fp32: 8, bf16: 16, int8/fp8: 32
    per_row = hw_lanes * (4 * itemsize + 8)
    by_vmem = int(vmem_limit * 0.7) // per_row
    if by_vmem < 8:
        return None                          # even an 8-row block won't fit
    # ~8 MiB input blocks hit the DMA sweet spot; bigger only trims the
    # ~0.35 us/step fixed overhead.
    by_block = max(8, (8 << 20) // (hw_lanes * itemsize))
    tile = min(by_vmem, by_block)
    if bc > 2 * min_tile:
        # Guarantee >= 2 grid steps so ("parallel",) can use both v7x TCs.
        tile = min(tile, _round_up((bc + 1) // 2, min_tile))
    tile = max(min_tile, tile // min_tile * min_tile)
    tile = min(tile, _round_up(bc, min_tile))   # don't overshoot small B*C
    return max(8, tile // 8 * 8)


def _choose_chunk(hw, itemsize, vmem_limit, force_chunk):
    """Row tile + HW chunk (multiple of 128) for the chunked fallback."""
    min_tile = max(8, 32 // itemsize)
    tile = min_tile
    if force_chunk is not None:
        chunk = max(128, force_chunk // 128 * 128)
    else:
        per_elem = 4 * itemsize + 8
        by_vmem = int(vmem_limit * 0.6) // (tile * per_elem)
        by_block = (4 << 20) // (tile * itemsize)    # ~4 MiB input block
        chunk = max(128, min(by_vmem, by_block) // 128 * 128)
    return tile, min(chunk, _round_up(hw, 128))


def _pack_params(weight, bias, bc, bc_pad):
    p = jnp.stack([weight.astype(jnp.float32), bias.astype(jnp.float32)], axis=-1)
    if bc_pad != bc:
        p = jnp.pad(p, ((0, bc_pad - bc), (0, 0)))
    return p


# ---------------------------------------------------------------------------
# Wrapper
# ---------------------------------------------------------------------------

def adaptive_instance_norm_2d(x, weight, bias, *, eps=1e-5, force_hw_chunk=None):
    """x: (B, C, H, W); weight, bias: (B*C,). Returns (B, C, H, W)."""
    B, C, H, W = x.shape
    BC, HW = B * C, H * W
    itemsize = jnp.dtype(x.dtype).itemsize
    vmem_limit = _vmem_limit_bytes()

    x2 = x.reshape(BC, HW)               # free view of contiguous NCHW

    tile = None if force_hw_chunk is not None else _choose_tile(
        BC, HW, itemsize, vmem_limit)

    if tile is not None:
        # ---------------- single-pass path: full H*W per block -------------
        n_rows = pl.cdiv(BC, tile)
        bc_pad = n_rows * tile
        params = _pack_params(weight, bias, BC, bc_pad)

        out2 = pl.pallas_call(
            functools.partial(_adain_kernel, eps=eps, inv_hw=1.0 / HW),
            out_shape=jax.ShapeDtypeStruct((BC, HW), x.dtype),
            grid_spec=pltpu.PrefetchScalarGridSpec(
                num_scalar_prefetch=0,
                grid=(n_rows,),
                in_specs=[
                    pl.BlockSpec((tile, HW), lambda i: (i, 0)),
                    pl.BlockSpec((tile, 2), lambda i: (i, 0)),
                ],
                out_specs=pl.BlockSpec((tile, HW), lambda i: (i, 0)),
            ),
            compiler_params=pltpu.CompilerParams(
                dimension_semantics=("parallel",),
                vmem_limit_bytes=vmem_limit,
            ),
        )(x2, params)
        return out2.reshape(B, C, H, W)

    # ---------------- chunked-HW fallback (very large H*W, or forced) ------
    tile, chunk = _choose_chunk(HW, itemsize, vmem_limit, force_hw_chunk)
    n_rows = pl.cdiv(BC, tile)
    n_k = pl.cdiv(HW, chunk)
    bc_pad = n_rows * tile
    params = _pack_params(weight, bias, BC, bc_pad)

    # Pass 1: accumulate per-row stats, emit fused (scale, shift) per row.
    sc = pl.pallas_call(
        functools.partial(_stats_kernel, eps=eps, hw=HW, inv_hw=1.0 / HW),
        out_shape=jax.ShapeDtypeStruct((bc_pad, 2), jnp.float32),
        grid_spec=pltpu.PrefetchScalarGridSpec(
            num_scalar_prefetch=0,
            grid=(n_rows, n_k),
            in_specs=[
                pl.BlockSpec((tile, chunk), lambda i, k: (i, k)),
                pl.BlockSpec((tile, 2), lambda i, k: (i, 0)),
            ],
            out_specs=pl.BlockSpec((tile, 2), lambda i, k: (i, 0)),
            scratch_shapes=[
                pltpu.VMEM((tile, 1), jnp.float32),
                pltpu.VMEM((tile, 1), jnp.float32),
            ],
        ),
        compiler_params=pltpu.CompilerParams(
            dimension_semantics=("parallel", "arbitrary"),
            vmem_limit_bytes=vmem_limit,
        ),
    )(x2, params)

    # Pass 2: out = x * scale + shift, chunk by chunk.
    out2 = pl.pallas_call(
        _apply_kernel,
        out_shape=jax.ShapeDtypeStruct((BC, HW), x.dtype),
        grid_spec=pltpu.PrefetchScalarGridSpec(
            num_scalar_prefetch=0,
            grid=(n_rows, n_k),
            in_specs=[
                pl.BlockSpec((tile, chunk), lambda i, k: (i, k)),
                pl.BlockSpec((tile, 2), lambda i, k: (i, 0)),
            ],
            out_specs=pl.BlockSpec((tile, chunk), lambda i, k: (i, k)),
        ),
        compiler_params=pltpu.CompilerParams(
            dimension_semantics=("parallel", "arbitrary"),
            vmem_limit_bytes=vmem_limit,
        ),
    )(x2, sc)
    return out2.reshape(B, C, H, W)


# ---------------------------------------------------------------------------
# Reference + self-test
# ---------------------------------------------------------------------------

def _reference(x, weight, bias, eps=1e-5):
    B, C, H, W = x.shape
    xr = x.reshape(B * C, H * W).astype(jnp.float32)
    mean = jnp.mean(xr, axis=-1, keepdims=True)
    var = jnp.mean((xr - mean) ** 2, axis=-1, keepdims=True)
    out = (xr - mean) / jnp.sqrt(var + eps) * weight.astype(jnp.float32)[:, None] \
          + bias.astype(jnp.float32)[:, None]
    return out.reshape(B, C, H, W).astype(x.dtype)


if __name__ == "__main__":
    key = jax.random.PRNGKey(0)

    def run_case(case_key, B, C, H, W, dtype, force_hw_chunk=None, tol=1e-4):
        kx, kw, kb = jax.random.split(case_key, 3)
        x = jax.random.normal(kx, (B, C, H, W), dtype=jnp.float32).astype(dtype)
        # In the PyTorch module, weight/bias are assigned externally (one value
        # per B*C channel of the flattened view). Deterministic init here.
        weight = jax.random.normal(kw, (B * C,), dtype=jnp.float32) * 0.5 + 1.0
        bias = jax.random.normal(kb, (B * C,), dtype=jnp.float32) * 0.1

        out = adaptive_instance_norm_2d(x, weight, bias, eps=1e-5,
                                        force_hw_chunk=force_hw_chunk)
        out = jax.block_until_ready(out)
        ref = _reference(x, weight, bias, eps=1e-5)

        assert out.shape == (B, C, H, W)
        assert out.dtype == x.dtype
        ok = jnp.allclose(out.astype(jnp.float32), ref.astype(jnp.float32),
                          atol=tol, rtol=tol)
        assert ok, f"mismatch vs reference for shape {(B, C, H, W)} dtype {dtype}"

    keys = jax.random.split(key, 4)
    # 1) Module-sized, aligned case: single-pass path.
    run_case(keys[0], 2, 4, 16, 16, jnp.float32)
    # 2) Unaligned B*C (ragged row blocks) and H*W not a multiple of 128.
    run_case(keys[1], 3, 7, 15, 15, jnp.float32)
    # 3) bf16 input (fp32 stats, bf16 store, 16-row sublane packing).
    run_case(keys[2], 4, 4, 16, 16, jnp.bfloat16, tol=2e-2)
    # 4) Chunked-HW fallback forced with a small chunk (exercises the ragged
    #    last-chunk lane mask and the resident stat accumulators).
    run_case(keys[3], 3, 7, 15, 15, jnp.float32, force_hw_chunk=128)

    print("KERNEL_OK")
</pallas_src>

<mosaic_0001>
module attributes {stable_mosaic.version = 11 : i64} {
  func.func @_adain_kernel(%arg0: i32, %arg1: memref<8x256xf32, #tpu.memory_space<vmem>>, %arg2: memref<8x2xf32, #tpu.memory_space<vmem>>, %arg3: memref<8x256xf32, #tpu.memory_space<vmem>>) attributes {dimension_semantics = [#tpu.dimension_semantics<parallel>], iteration_bounds = array<i64: 1>, scalar_prefetch = 0 : i64, scratch_operands = 0 : i64, tpu.core_type = #tpu.core_type<tc>, window_params = [{transform_indices = @transform_0, window_bounds = array<i64: 8, 256>}, {transform_indices = @transform_1, window_bounds = array<i64: 8, 2>}, {transform_indices = @transform_2, window_bounds = array<i64: 8, 256>}]} {
    %c0 = arith.constant 0 : index
    %c0_0 = arith.constant 0 : index
    %0 = vector.load %arg1[%c0, %c0_0] : memref<8x256xf32, #tpu.memory_space<vmem>>, vector<8x256xf32>
    %cst = arith.constant dense<0.000000e+00> : vector<8xf32>
    %1 = vector.multi_reduction <add>, %0, %cst [1] : vector<8x256xf32> to vector<8xf32>
    %2 = vector.shape_cast %1 : vector<8xf32> to vector<8x1xf32>
    %cst_1 = arith.constant 3.906250e-03 : f32
    %3 = vector.broadcast %cst_1 : f32 to vector<8x1xf32>
    %4 = arith.mulf %2, %3 : vector<8x1xf32>
    %c0_2 = arith.constant 0 : index
    %c0_3 = arith.constant 0 : index
    %5 = vector.load %arg1[%c0_2, %c0_3] : memref<8x256xf32, #tpu.memory_space<vmem>>, vector<8x256xf32>
    %6 = vector.broadcast %4 : vector<8x1xf32> to vector<8x256xf32>
    %7 = arith.subf %5, %6 : vector<8x256xf32>
    %8 = arith.mulf %7, %7 : vector<8x256xf32>
    %cst_4 = arith.constant dense<0.000000e+00> : vector<8xf32>
    %9 = vector.multi_reduction <add>, %8, %cst_4 [1] : vector<8x256xf32> to vector<8xf32>
    %10 = vector.shape_cast %9 : vector<8xf32> to vector<8x1xf32>
    %cst_5 = arith.constant 3.906250e-03 : f32
    %11 = vector.broadcast %cst_5 : f32 to vector<8x1xf32>
    %12 = arith.mulf %10, %11 : vector<8x1xf32>
    %cst_6 = arith.constant 9.99999974E-6 : f32
    %13 = vector.broadcast %cst_6 : f32 to vector<8x1xf32>
    %14 = arith.addf %12, %13 : vector<8x1xf32>
    %15 = math.rsqrt %14 : vector<8x1xf32>
    %c0_7 = arith.constant 0 : index
    %c0_8 = arith.constant 0 : index
    %16 = vector.load %arg2[%c0_7, %c0_8] : memref<8x2xf32, #tpu.memory_space<vmem>>, vector<8x1xf32>
    %c0_9 = arith.constant 0 : index
    %c1 = arith.constant 1 : index
    %17 = vector.load %arg2[%c0_9, %c1] : memref<8x2xf32, #tpu.memory_space<vmem>>, vector<8x1xf32>
    %18 = arith.mulf %15, %16 : vector<8x1xf32>
    %19 = arith.mulf %4, %18 : vector<8x1xf32>
    %20 = arith.subf %17, %19 : vector<8x1xf32>
    %c0_10 = arith.constant 0 : index
    %c0_11 = arith.constant 0 : index
    %21 = vector.load %arg1[%c0_10, %c0_11] : memref<8x256xf32, #tpu.memory_space<vmem>>, vector<8x256xf32>
    %22 = vector.broadcast %18 : vector<8x1xf32> to vector<8x256xf32>
    %23 = arith.mulf %21, %22 : vector<8x256xf32>
    %24 = vector.broadcast %20 : vector<8x1xf32> to vector<8x256xf32>
    %25 = arith.addf %23, %24 : vector<8x256xf32>
    %c0_12 = arith.constant 0 : index
    %c0_13 = arith.constant 0 : index
    %26 = vector.load %arg3[%c0_12, %c0_13] : memref<8x256xf32, #tpu.memory_space<vmem>>, vector<8x256xf32>
    tpu.vector_store %arg3[%c0_12, %c0_13], %25 {strides = array<i32>} : memref<8x256xf32, #tpu.memory_space<vmem>>, vector<8x256xf32>,
    return
  }
  func.func @transform_0(%arg0: i32) -> (i32, i32) {
    %c0_i32 = arith.constant 0 : i32
    %c0_i32_0 = arith.constant 0 : i32
    return %arg0, %c0_i32 : i32, i32
  }
  func.func @transform_1(%arg0: i32) -> (i32, i32) {
    %c0_i32 = arith.constant 0 : i32
    %c0_i32_0 = arith.constant 0 : i32
    return %arg0, %c0_i32 : i32, i32
  }
  func.func @transform_2(%arg0: i32) -> (i32, i32) {
    %c0_i32 = arith.constant 0 : i32
    %c0_i32_0 = arith.constant 0 : i32
    return %arg0, %c0_i32 : i32, i32
  }
}

</mosaic_0001>

<llo_original>
// kernel: tpu_custom_call.1
$region0: #{tpu_custom_call.1}
  #allocation0 [shape = 'u32[]', space=smem, size = 0x4, offset = 0x4, fixed_abs, tag = 'smem constant byte address 0x4 - core index']
  #allocation1 [shape = 'u32[144,128]{1,0:T(1,128)}', space=vmem, size = 0x12000, scoped, tag = 'internal scratch']
  %s0 = inlined_call_operand.hbm [shape: f32[8,256], index: 0, kind: input, shape index: {}]
  %s1 = inlined_call_operand.hbm [shape: f32[8,2], index: 1, kind: input, shape index: {}]
  %s2 = inlined_call_operand.hbm [shape: f32[8,256], index: 2, kind: output, shape index: {}]
  %s3 = sld [smem:[#allocation0]]
  $region26: #{tpu_custom_call.1} parent=0
    _
  %s5 = ssub.s32 1, %s3
  %s6 = scalar_select 0, %s5, %s3
  $region1: #{tpu_custom_call.1} parent=0
    #allocation2 [shape = 'u8[8192]{0}', space=vmem, size = 0x2000, scoped, tag = 'input window, operand 0, single buffered']
    #allocation3 [shape = 's32[1]{0}', space=sflag, size = 0x4, scoped, tag = 'scoped memory for tpu_custom_call.1']
    #allocation4 [shape = 's32[1]{0}', space=sflag, size = 0x4, scoped, tag = 'scoped memory for tpu_custom_call.1']
    #allocation5 [shape = 'u8[4096]{0}', space=vmem, size = 0x1000, scoped, tag = 'input window, operand 1, single buffered']
    #allocation6 [shape = 's32[1]{0}', space=sflag, size = 0x4, scoped, tag = 'scoped memory for tpu_custom_call.1']
    #allocation7 [shape = 'u8[8192]{0}', space=vmem, size = 0x2000, scoped, tag = 'output window, operand 0, single buffered']
    %7 = vsyncpa [#allocation3], 0
    %8 = vsyncpa [#allocation6], 0
    %9 = vsyncpa [#allocation4], 0
    // Predicated region
    $region2: #{tpu_custom_call.1} parent=1 // pred_check
      _
    $region3: #{tpu_custom_call.1} parent=1 // pred_check_branch
      %11 = sbr.rel (0) target = $region5
    $region4: #{tpu_custom_call.1} parent=1 // pred_region
      %s13 = ssub.s32 256, 256
      %14 = vsyncadd [#allocation3], %s13
      %s16 = sshll.u32 [#allocation2], 4
      %s17 = int_to_ptr.vmem [resolvable:$true] %s16
      %19 = dma.hbm_to_vmem [thread:$0]  %s0, 256, %s17, [#allocation3]
    $region5: #{tpu_custom_call.1} parent=1 // pred_fallthru
      _
    // Predicated region
    $region6: #{tpu_custom_call.1} parent=1 // pred_check
      _
    $region7: #{tpu_custom_call.1} parent=1 // pred_check_branch
      %21 = sbr.rel (0) target = $region9
    $region8: #{tpu_custom_call.1} parent=1 // pred_region
      %s23 = ssub.s32 128, 128
      %24 = vsyncadd [#allocation6], %s23
      %s26 = sshll.u32 [#allocation5], 4
      %s27 = int_to_ptr.vmem [resolvable:$true] %s26
      %29 = dma.hbm_to_vmem [thread:$0]  %s1, 128, %s27, [#allocation6]
    $region9: #{tpu_custom_call.1} parent=1 // pred_fallthru
      _
    // Predicated region
    $region10: #{tpu_custom_call.1} parent=1 // pred_check
      _
    $region11: #{tpu_custom_call.1} parent=1 // pred_check_branch
      %31 = sbr.rel (0) target = $region13
    $region12: #{tpu_custom_call.1} parent=1 // pred_region
      %32 = dma.done [#allocation3], 256
    $region13: #{tpu_custom_call.1} parent=1 // pred_fallthru
      _
    // Predicated region
    $region14: #{tpu_custom_call.1} parent=1 // pred_check
      _
    $region15: #{tpu_custom_call.1} parent=1 // pred_check_branch
      %34 = sbr.rel (0) target = $region17
    $region16: #{tpu_custom_call.1} parent=1 // pred_region
      %35 = dma.done [#allocation6], 128
    $region17: #{tpu_custom_call.1} parent=1 // pred_fallthru
      _
    %v36 = vld [vmem:[#allocation2] sm:$0xff]
    %v37 = vld [vmem:[#allocation2 + $0x8] sm:$0xff]
    %v38 = vadd.f32 %v36, %v37
    %39 = vadd.xlane.f32.xlu0 %v38
    %v40 = vpop.xlane.xlu0 %39
    %v41 = vmul.f32 %v40, 0.00390625
    %v42 = vsub.f32 %v36, %v41
    %v43 = vsub.f32 %v37, %v41
    %v44 = vmul.f32 %v42, %v42
    %v45 = vmul.f32 %v43, %v43
    %v46 = vadd.f32 %v44, %v45
    %47 = vadd.xlane.f32.xlu0 %v46
    %v48 = vpop.xlane.xlu0 %47
    %v49 = vmul.f32 %v48, 0.00390625
    %v50 = vadd.f32 %v49, 1e-05
    %v51 = vrsqrt.pop %v50
    %v52 = vld [vmem:[#allocation5] sm:$0xff]
    %v53 = vmul.f32 %v51, %v52
    %v54 = vmul.f32 %v41, %v53
    %56 = vrot.lane.b32.xlu0 %v54, 1
    %v57 = vpop.permute.xlu0 %56
    %v59 = vsub.f32 %v52, %v57
    %61 = vset.pattern.permute.xlu0 0
    %62 = vperm.xlu0 %61, %v53
    %v63 = vpop.permute.xlu0 %62
    %v65 = vmul.f32 %v36, %v63
    %v66 = vmul.f32 %v37, %v63
    %68 = vset.pattern.permute.xlu0 1
    %69 = vperm.xlu0 %68, %v59
    %v70 = vpop.permute.xlu0 %69
    %v72 = vadd.f32 %v65, %v70
    %v73 = vadd.f32 %v66, %v70
    %74 = vst [vmem:[#allocation7] sm:$0xff] %v72
    %75 = vst [vmem:[#allocation7 + $0x8] sm:$0xff] %v73
    // Predicated region
    $region18: #{tpu_custom_call.1} parent=1 // pred_check
      _
    $region19: #{tpu_custom_call.1} parent=1 // pred_check_branch
      %77 = sbr.rel (0) target = $region21
    $region20: #{tpu_custom_call.1} parent=1 // pred_region
      %s79 = ssub.s32 256, 256
      %80 = vsyncadd [#allocation4], %s79
      %s82 = sshll.u32 [#allocation7], 4
      %s83 = int_to_ptr.vmem [resolvable:$true] %s82
      %85 = dma.vmem_to_hbm [thread:$0]  %s83, 256, %s2, [#allocation4]
    $region21: #{tpu_custom_call.1} parent=1 // pred_fallthru
      _
    // Predicated region
    $region22: #{tpu_custom_call.1} parent=1 // pred_check
      _
    $region23: #{tpu_custom_call.1} parent=1 // pred_check_branch
      %87 = sbr.rel (0) target = $region25
    $region24: #{tpu_custom_call.1} parent=1 // pred_region
      %88 = dma.done [#allocation4], 256
    $region25: #{tpu_custom_call.1} parent=1 // pred_fallthru
      _
    %89 = vsyncpa [#allocation3], 1
    %90 = vsyncpa [#allocation6], 1
    %91 = vsyncpa [#allocation4], 1

</llo_original>
